<compile_context>
chip_gen: v7x
topology: tpu7x:2x2x1
jax: 0.10.0
libtpu: 0.0.40
codegen_flags: <defaults>
</compile_context>

<pallas_src>
import jax
import jax.numpy as jnp
from jax import lax
from jax.experimental import pallas as pl
from jax.experimental.pallas import tpu as pltpu


def _round_up(x, m):
    return ((x + m - 1) // m) * m


def _clip_loss_kernel(scale_ref, nvalid_ref, a_ref, b_ref, loss_ref,
                      m_row, l_row, d_row, m_col, l_col, loss_acc):
    i = pl.program_id(0)          # row-tile index (loc_month)
    j = pl.program_id(1)          # column-tile index (chelsa)
    ni = pl.num_programs(0)
    nj = pl.num_programs(1)
    t_m = a_ref.shape[0]
    t_n = b_ref.shape[0]

    neg_inf = jnp.float32(-jnp.inf)
    scale = scale_ref[0, 0]               # exp(logit_scale), pre-computed in wrapper
    n_valid = nvalid_ref[0, 0]            # runtime batch size (rows/cols beyond are padding)

    # ---- init accumulators ------------------------------------------------------
    @pl.when(jnp.logical_and(i == 0, j == 0))
    def _():
        loss_acc[...] = jnp.zeros_like(loss_acc)
        m_col[...] = jnp.full(m_col.shape, neg_inf, jnp.float32)
        l_col[...] = jnp.zeros_like(l_col)

    @pl.when(j == 0)
    def _():
        m_row[...] = jnp.full(m_row.shape, neg_inf, jnp.float32)
        l_row[...] = jnp.zeros_like(l_row)
        d_row[...] = jnp.zeros_like(d_row)

    # ---- scaled similarity tile: bf16 MXU matmul, f32 accumulate -----------------
    # Inputs are pre-normalized bf16; contract feature dims directly (NT layout).
    logits = scale * lax.dot_general(
        a_ref[...], b_ref[...], (((1,), (1,)), ((), ())),
        preferred_element_type=jnp.float32)                       # (t_m, t_n) f32

    # ---- validity masks (padded logits are exactly 0, so no NaNs anywhere) -------
    row_ids = i * t_m + lax.broadcasted_iota(jnp.int32, (t_m, 1), 0)
    col_ids = j * t_n + lax.broadcasted_iota(jnp.int32, (1, t_n), 1)
    row_valid = row_ids < n_valid                                  # (t_m, 1)
    col_valid = col_ids < n_valid                                  # (1, t_n)

    # ---- diagonal (correct-pair) logits: pulled from the resident logits tile -----
    # Only tiles whose row/column ranges overlap can hold diagonal entries.
    @pl.when(jnp.logical_and(j * t_n < (i + 1) * t_m, i * t_m < (j + 1) * t_n))
    def _():
        dmask = row_ids == col_ids
        d_row[...] += jnp.sum(jnp.where(dmask, logits, 0.0), axis=1, keepdims=True)

    # ---- row-direction online softmax (loc -> chelsa): the ONLY full-tile exp -----
    lr = jnp.where(col_valid, logits, neg_inf)                     # mask padded columns
    m_old = m_row[...]
    m_new = jnp.maximum(m_old, jnp.max(lr, axis=1, keepdims=True))  # (t_m, 1)
    p = jnp.exp(lr - m_new)                                         # (t_m, t_n)
    l_row[...] = jnp.exp(m_old - m_new) * l_row[...] + jnp.sum(p, axis=1, keepdims=True)
    m_row[...] = m_new

    # ---- column-direction online softmax (chelsa -> loc), derived from p ----------
    #   sum_r exp(logit_rc - mc_new_c)
    #     = exp(g - mc_new_c) * sum_r [row_valid_r] * p_rc * exp(m_new_r - g)
    # with g = max_r m_new_r, so every exp over a (t_m, t_n)/(t_m, 1) tensor has arg <= 0.
    g = jnp.max(m_new)
    mc_old = m_col[j]                                               # (1, t_n)
    mc_new = jnp.maximum(mc_old, jnp.max(logits, axis=0, keepdims=True))
    w = jnp.where(row_valid, jnp.exp(m_new - g), 0.0)               # (t_m, 1)
    col_part = jnp.sum(p * w, axis=0, keepdims=True)                # (1, t_n)
    s = jnp.where(col_part > 0.0, jnp.exp(g - mc_new) * col_part, 0.0)
    l_col[j] = jnp.exp(mc_old - mc_new) * l_col[j] + s
    m_col[j] = mc_new

    # ---- finalize this row tile: sum_i (lse_row_i - 2 * diag_i) --------------------
    # (total loss * 2N = sum_rows lse_row + sum_cols lse_col - 2 * sum diag)
    @pl.when(j == nj - 1)
    def _():
        lse_r = m_row[...] + jnp.log(l_row[...])
        per_row = lse_r - 2.0 * d_row[...]
        loss_acc[...] += jnp.sum(jnp.where(row_valid, per_row, 0.0),
                                 axis=(0, 1), keepdims=True)

    # ---- very last grid step: add sum_j lse_col_j and emit the mean loss -----------
    @pl.when(jnp.logical_and(i == ni - 1, j == nj - 1))
    def _():
        lse_c = (m_col[...] + jnp.log(l_col[...]))[:, 0, :]          # (nj, t_n)
        gcol = (lax.broadcasted_iota(jnp.int32, lse_c.shape, 0) * t_n
                + lax.broadcasted_iota(jnp.int32, lse_c.shape, 1))
        col_sum = jnp.sum(jnp.where(gcol < n_valid, lse_c, 0.0))
        nf = n_valid.astype(jnp.float32)
        loss_ref[...] = (loss_acc[...] + col_sum) / (2.0 * nf)


def softmax_clip_loss(loc_month_emb, chelsa_emb, logit_scale,
                      *, block_rows=1024, block_cols=256):
    """Pallas implementation of SoftmaxClipLoss.forward. Returns a scalar f32 loss."""
    n, d = loc_month_emb.shape
    assert chelsa_emb.shape == (n, d)

    # ---- wrapper-side prep (fused by XLA): normalize in f32, cast to bf16, pad ----
    a = loc_month_emb.astype(jnp.float32)
    b = chelsa_emb.astype(jnp.float32)
    a = (a * lax.rsqrt(jnp.sum(a * a, axis=1, keepdims=True))).astype(jnp.bfloat16)
    b = (b * lax.rsqrt(jnp.sum(b * b, axis=1, keepdims=True))).astype(jnp.bfloat16)

    # ---- tile selection: lane-dense column tile t_n, large row tile t_m -----------
    t_n = min(block_cols, _round_up(n, 8))
    t_n = max(8, _round_up(t_n, 8))
    if n <= t_n:
        t_n = _round_up(n, 8)
        t_m = t_n
        n_pad = t_n
    else:
        n_pad = _round_up(n, t_n)
        m_tiles = n_pad // t_n
        max_r = max(1, min(block_rows // t_n, m_tiles))
        r = max(rr for rr in range(1, max_r + 1) if m_tiles % rr == 0)
        t_m = r * t_n
    ni = n_pad // t_m
    nj = n_pad // t_n

    if n_pad != n:
        pad = ((0, n_pad - n), (0, 0))
        a = jnp.pad(a, pad)   # padded AFTER normalization -> exact zeros, zero logits
        b = jnp.pad(b, pad)

    scale = jnp.exp(jnp.asarray(logit_scale, jnp.float32)).reshape(1, 1)  # hoisted exp
    n_valid = jnp.full((1, 1), n, jnp.int32)

    # ---- VMEM budget (includes layout padding of the scratch buffers) -------------
    vmem_est = (2 * t_m * d * 2 + 2 * t_n * d * 2     # double-buffered bf16 input tiles
                + 3 * t_m * 128 * 4                   # (t_m,1) f32 scratch, lane-padded
                + 2 * nj * 8 * t_n * 4                # (nj,1,t_n) f32 scratch, sublane-padded
                + 6 * t_m * t_n * 4)                  # logits / p / mask temporaries
    cap = 48 * 1024 * 1024                            # v7x-safe (64 MiB VMEM per TC)
    try:
        if pltpu.get_tpu_info().vmem_capacity_bytes >= (100 << 20):
            cap = 100 * 1024 * 1024                   # v5e/v6e have 128 MiB VMEM
    except Exception:
        pass
    vmem_limit = int(min(max(2 * vmem_est, 32 * 1024 * 1024), cap))

    out = pl.pallas_call(
        _clip_loss_kernel,
        out_shape=jax.ShapeDtypeStruct((1, 1), jnp.float32),
        grid=(ni, nj),
        in_specs=[
            pl.BlockSpec(memory_space=pltpu.MemorySpace.SMEM),   # exp(logit_scale)
            pl.BlockSpec(memory_space=pltpu.MemorySpace.SMEM),   # n_valid
            pl.BlockSpec((t_m, d), lambda i, j: (i, 0)),         # loc_month_emb row tile
            pl.BlockSpec((t_n, d), lambda i, j: (j, 0)),         # chelsa_emb column tile
        ],
        out_specs=pl.BlockSpec((1, 1), lambda i, j: (0, 0)),
        scratch_shapes=[
            pltpu.VMEM((t_m, 1), jnp.float32),       # m_row (running row max)
            pltpu.VMEM((t_m, 1), jnp.float32),       # l_row (running row sum)
            pltpu.VMEM((t_m, 1), jnp.float32),       # d_row (diagonal logits)
            pltpu.VMEM((nj, 1, t_n), jnp.float32),   # m_col (all column tiles)
            pltpu.VMEM((nj, 1, t_n), jnp.float32),   # l_col (all column tiles)
            pltpu.VMEM((1, 1), jnp.float32),         # loss accumulator
        ],
        compiler_params=pltpu.CompilerParams(
            # Column accumulators are shared across row tiles -> sequential grid.
            dimension_semantics=("arbitrary", "arbitrary"),
            vmem_limit_bytes=vmem_limit,
        ),
    )(scale, n_valid, a, b)
    return out[0, 0]


def _reference_loss(loc_month_emb, chelsa_emb, logit_scale):
    """Pure-JAX reference mirroring the PyTorch module, for verification."""
    a = loc_month_emb / jnp.linalg.norm(loc_month_emb, axis=1, keepdims=True)
    b = chelsa_emb / jnp.linalg.norm(chelsa_emb, axis=1, keepdims=True)
    logits = jnp.exp(logit_scale) * a @ b.T
    diag = jnp.diagonal(logits)
    lse_r = jax.nn.logsumexp(logits, axis=1)
    lse_c = jax.nn.logsumexp(logits, axis=0)
    return 0.5 * (jnp.mean(lse_r - diag) + jnp.mean(lse_c - diag))


if __name__ == "__main__":
    # Deterministic parameter init: logit_scale = log(1/0.07) (standard CLIP init).
    logit_scale_init = float(jnp.log(1.0 / 0.07))
    key = jax.random.PRNGKey(0)
    k1, k2, k3, k4, k5, k6 = jax.random.split(key, 6)

    # Test 1: tiny batch, single tile.
    N, D = 8, 32
    loc = jax.random.normal(k1, (N, D), dtype=jnp.float32)
    che = jax.random.normal(k2, (N, D), dtype=jnp.float32)
    loss = jax.block_until_ready(softmax_clip_loss(loc, che, logit_scale_init))
    ref = _reference_loss(loc, che, logit_scale_init)
    assert jnp.allclose(loss, ref, atol=5e-2, rtol=5e-2), (loss, ref)

    # Test 2: ragged batch with rectangular tiles (t_m=16, t_n=8), multi row/col tiles,
    # padded rows AND padded columns (exercises online softmax + masking + diag overlap).
    N2, D2 = 41, 32
    loc2 = jax.random.normal(k3, (N2, D2), dtype=jnp.float32)
    che2 = jax.random.normal(k4, (N2, D2), dtype=jnp.float32)
    loss2 = jax.block_until_ready(
        softmax_clip_loss(loc2, che2, logit_scale_init, block_rows=16, block_cols=8))
    ref2 = _reference_loss(loc2, che2, logit_scale_init)
    assert jnp.allclose(loss2, ref2, atol=5e-2, rtol=5e-2), (loss2, ref2)

    # Test 3: default tiling path (lane-dense t_n=256, t_m=512, heavy padding).
    N3, D3 = 300, 64
    loc3 = jax.random.normal(k5, (N3, D3), dtype=jnp.float32)
    che3 = jax.random.normal(k6, (N3, D3), dtype=jnp.float32)
    loss3 = jax.block_until_ready(softmax_clip_loss(loc3, che3, logit_scale_init))
    ref3 = _reference_loss(loc3, che3, logit_scale_init)
    assert jnp.allclose(loss3, ref3, atol=5e-2, rtol=5e-2), (loss3, ref3)

    print("KERNEL_OK")
</pallas_src>

<mosaic_0001>
module attributes {stable_mosaic.version = 11 : i64} {
  func.func @_clip_loss_kernel(%arg0: i32, %arg1: i32, %arg2: memref<1x1xf32, #tpu.memory_space<smem>>, %arg3: memref<1x1xi32, #tpu.memory_space<smem>>, %arg4: memref<8x32xbf16, #tpu.memory_space<vmem>>, %arg5: memref<8x32xbf16, #tpu.memory_space<vmem>>, %arg6: memref<1x1xf32, #tpu.memory_space<vmem>>, %arg7: memref<8x1xf32, #tpu.memory_space<vmem>>, %arg8: memref<8x1xf32, #tpu.memory_space<vmem>>, %arg9: memref<8x1xf32, #tpu.memory_space<vmem>>, %arg10: memref<1x1x8xf32, #tpu.memory_space<vmem>>, %arg11: memref<1x1x8xf32, #tpu.memory_space<vmem>>, %arg12: memref<1x1xf32, #tpu.memory_space<vmem>>) attributes {dimension_semantics = [#tpu.dimension_semantics<arbitrary>, #tpu.dimension_semantics<arbitrary>], iteration_bounds = array<i64: 1, 1>, scalar_prefetch = 0 : i64, scratch_operands = 6 : i64, tpu.core_type = #tpu.core_type<tc>, window_params = [{transform_indices = @transform_0, window_bounds = array<i64: 1, 1>}, {transform_indices = @transform_1, window_bounds = array<i64: 1, 1>}, {transform_indices = @transform_2, window_bounds = array<i64: 8, 32>}, {transform_indices = @transform_3, window_bounds = array<i64: 8, 32>}, {pipeline_mode = #tpu.pipeline_mode<synchronous>, transform_indices = @transform_4, window_bounds = array<i64: 1, 1>}]} {
    %c0 = arith.constant 0 : index
    %c0_0 = arith.constant 0 : index
    %0 = memref.load %arg2[%c0, %c0_0] : memref<1x1xf32, #tpu.memory_space<smem>>
    %c0_1 = arith.constant 0 : index
    %c0_2 = arith.constant 0 : index
    %1 = memref.load %arg3[%c0_1, %c0_2] : memref<1x1xi32, #tpu.memory_space<smem>>
    %c0_i32 = arith.constant 0 : i32
    %2 = arith.cmpi eq, %arg0, %c0_i32 : i32
    %c0_i32_3 = arith.constant 0 : i32
    %3 = arith.cmpi eq, %arg1, %c0_i32_3 : i32
    %4 = arith.andi %2, %3 : i1
    %5 = arith.extui %4 : i1 to i32
    %cst = arith.constant 0xFF800000 : f32
    %c0_i32_4 = arith.constant 0 : i32
    %6 = arith.cmpi ne, %5, %c0_i32_4 : i32
    scf.if %6 {
      %cst_50 = arith.constant 0.000000e+00 : f32
      %108 = vector.broadcast %cst_50 : f32 to vector<1x1xf32>
      %c0_51 = arith.constant 0 : index
      %c0_52 = arith.constant 0 : index
      %109 = vector.load %arg12[%c0_51, %c0_52] : memref<1x1xf32, #tpu.memory_space<vmem>>, vector<1x1xf32>
      tpu.vector_store %arg12[%c0_51, %c0_52], %108 {strides = array<i32>} : memref<1x1xf32, #tpu.memory_space<vmem>>, vector<1x1xf32>,
      %110 = vector.broadcast %cst : f32 to vector<1x1x8xf32>
      %c0_53 = arith.constant 0 : index
      %c0_54 = arith.constant 0 : index
      %c0_55 = arith.constant 0 : index
      %111 = vector.load %arg10[%c0_53, %c0_54, %c0_55] : memref<1x1x8xf32, #tpu.memory_space<vmem>>, vector<1x1x8xf32>
      tpu.vector_store %arg10[%c0_53, %c0_54, %c0_55], %110 {strides = array<i32>} : memref<1x1x8xf32, #tpu.memory_space<vmem>>, vector<1x1x8xf32>,
      %cst_56 = arith.constant 0.000000e+00 : f32
      %112 = vector.broadcast %cst_56 : f32 to vector<1x1x8xf32>
      %c0_57 = arith.constant 0 : index
      %c0_58 = arith.constant 0 : index
      %c0_59 = arith.constant 0 : index
      %113 = vector.load %arg11[%c0_57, %c0_58, %c0_59] : memref<1x1x8xf32, #tpu.memory_space<vmem>>, vector<1x1x8xf32>
      tpu.vector_store %arg11[%c0_57, %c0_58, %c0_59], %112 {strides = array<i32>} : memref<1x1x8xf32, #tpu.memory_space<vmem>>, vector<1x1x8xf32>,
    } else {
    }
    %c0_i32_5 = arith.constant 0 : i32
    %7 = arith.cmpi eq, %arg1, %c0_i32_5 : i32
    %8 = arith.extui %7 : i1 to i32
    %cst_6 = arith.constant 0xFF800000 : f32
    %c0_i32_7 = arith.constant 0 : i32
    %9 = arith.cmpi ne, %8, %c0_i32_7 : i32
    scf.if %9 {
      %108 = vector.broadcast %cst_6 : f32 to vector<8x1xf32>
      %c0_50 = arith.constant 0 : index
      %c0_51 = arith.constant 0 : index
      %109 = vector.load %arg7[%c0_50, %c0_51] : memref<8x1xf32, #tpu.memory_space<vmem>>, vector<8x1xf32>
      tpu.vector_store %arg7[%c0_50, %c0_51], %108 {strides = array<i32>} : memref<8x1xf32, #tpu.memory_space<vmem>>, vector<8x1xf32>,
      %cst_52 = arith.constant 0.000000e+00 : f32
      %110 = vector.broadcast %cst_52 : f32 to vector<8x1xf32>
      %c0_53 = arith.constant 0 : index
      %c0_54 = arith.constant 0 : index
      %111 = vector.load %arg8[%c0_53, %c0_54] : memref<8x1xf32, #tpu.memory_space<vmem>>, vector<8x1xf32>
      tpu.vector_store %arg8[%c0_53, %c0_54], %110 {strides = array<i32>} : memref<8x1xf32, #tpu.memory_space<vmem>>, vector<8x1xf32>,
      %cst_55 = arith.constant 0.000000e+00 : f32
      %112 = vector.broadcast %cst_55 : f32 to vector<8x1xf32>
      %c0_56 = arith.constant 0 : index
      %c0_57 = arith.constant 0 : index
      %113 = vector.load %arg9[%c0_56, %c0_57] : memref<8x1xf32, #tpu.memory_space<vmem>>, vector<8x1xf32>
      tpu.vector_store %arg9[%c0_56, %c0_57], %112 {strides = array<i32>} : memref<8x1xf32, #tpu.memory_space<vmem>>, vector<8x1xf32>,
    } else {
    }
    %c0_8 = arith.constant 0 : index
    %c0_9 = arith.constant 0 : index
    %10 = vector.load %arg4[%c0_8, %c0_9] : memref<8x32xbf16, #tpu.memory_space<vmem>>, vector<8x32xbf16>
    %c0_10 = arith.constant 0 : index
    %c0_11 = arith.constant 0 : index
    %11 = vector.load %arg5[%c0_10, %c0_11] : memref<8x32xbf16, #tpu.memory_space<vmem>>, vector<8x32xbf16>
    %cst_12 = arith.constant dense<0.000000e+00> : vector<8x8xf32>
    %12 = tpu.matmul %10, %11, %cst_12 {dimension_numbers = #tpu.dot_dimension_numbers<[1], [1], [0], [0], [0, 0, 1, 0], [], []>} : vector<8x32xbf16>, vector<8x32xbf16>, vector<8x8xf32> -> vector<8x8xf32>
    %13 = vector.broadcast %0 : f32 to vector<8x8xf32>
    %14 = arith.mulf %13, %12 : vector<8x8xf32>
    %c8_i32 = arith.constant 8 : i32
    %15 = arith.muli %arg0, %c8_i32 : i32
    %16 = tpu.iota {dimensions = array<i32: 0>} : vector<8x1xi32>
    %17 = vector.broadcast %15 : i32 to vector<8x1xi32>
    %18 = arith.addi %17, %16 : vector<8x1xi32>
    %c8_i32_13 = arith.constant 8 : i32
    %19 = arith.muli %arg1, %c8_i32_13 : i32
    %20 = tpu.iota {dimensions = array<i32: 1>} : vector<1x8xi32>
    %21 = vector.broadcast %19 : i32 to vector<1x8xi32>
    %22 = arith.addi %21, %20 : vector<1x8xi32>
    %23 = vector.broadcast %1 : i32 to vector<8x1xi32>
    %24 = arith.cmpi slt, %18, %23 : vector<8x1xi32>
    %25 = vector.broadcast %1 : i32 to vector<1x8xi32>
    %26 = arith.cmpi slt, %22, %25 : vector<1x8xi32>
    %c8_i32_14 = arith.constant 8 : i32
    %27 = arith.muli %arg1, %c8_i32_14 : i32
    %c1_i32 = arith.constant 1 : i32
    %28 = arith.addi %arg0, %c1_i32 : i32
    %c8_i32_15 = arith.constant 8 : i32
    %29 = arith.muli %28, %c8_i32_15 : i32
    %30 = arith.cmpi slt, %27, %29 : i32
    %c8_i32_16 = arith.constant 8 : i32
    %31 = arith.muli %arg0, %c8_i32_16 : i32
    %c1_i32_17 = arith.constant 1 : i32
    %32 = arith.addi %arg1, %c1_i32_17 : i32
    %c8_i32_18 = arith.constant 8 : i32
    %33 = arith.muli %32, %c8_i32_18 : i32
    %34 = arith.cmpi slt, %31, %33 : i32
    %35 = arith.andi %30, %34 : i1
    %36 = arith.extui %35 : i1 to i32
    %c0_i32_19 = arith.constant 0 : i32
    %37 = arith.cmpi ne, %36, %c0_i32_19 : i32
    scf.if %37 {
      %108 = vector.broadcast %18 : vector<8x1xi32> to vector<8x8xi32>
      %109 = vector.broadcast %22 : vector<1x8xi32> to vector<8x8xi32>
      %110 = arith.cmpi eq, %108, %109 : vector<8x8xi32>
      %c0_50 = arith.constant 0 : index
      %c0_51 = arith.constant 0 : index
      %111 = vector.load %arg9[%c0_50, %c0_51] : memref<8x1xf32, #tpu.memory_space<vmem>>, vector<8x1xf32>
      %cst_52 = arith.constant 0.000000e+00 : f32
      %112 = vector.broadcast %cst_52 : f32 to vector<8x8xf32>
      %113 = arith.select %110, %14, %112 : vector<8x8xi1>, vector<8x8xf32>
      %cst_53 = arith.constant dense<0.000000e+00> : vector<8xf32>
      %114 = vector.multi_reduction <add>, %113, %cst_53 [1] : vector<8x8xf32> to vector<8xf32>
      %115 = vector.shape_cast %114 : vector<8xf32> to vector<8x1xf32>
      %116 = arith.addf %111, %115 : vector<8x1xf32>
      %c0_54 = arith.constant 0 : index
      %c0_55 = arith.constant 0 : index
      %117 = vector.load %arg9[%c0_54, %c0_55] : memref<8x1xf32, #tpu.memory_space<vmem>>, vector<8x1xf32>
      tpu.vector_store %arg9[%c0_54, %c0_55], %116 {strides = array<i32>} : memref<8x1xf32, #tpu.memory_space<vmem>>, vector<8x1xf32>,
    } else {
    }
    %cst_20 = arith.constant 0xFF800000 : f32
    %38 = vector.shape_cast %26 : vector<1x8xi1> to vector<1x8xi1>
    %39 = vector.broadcast %38 : vector<1x8xi1> to vector<8x8xi1>
    %40 = vector.broadcast %cst_20 : f32 to vector<8x8xf32>
    %41 = arith.select %39, %14, %40 : vector<8x8xi1>, vector<8x8xf32>
    %c0_21 = arith.constant 0 : index
    %c0_22 = arith.constant 0 : index
    %42 = vector.load %arg7[%c0_21, %c0_22] : memref<8x1xf32, #tpu.memory_space<vmem>>, vector<8x1xf32>
    %cst_23 = arith.constant dense<0xFF800000> : vector<8xf32>
    %43 = vector.multi_reduction <maximumf>, %41, %cst_23 [1] : vector<8x8xf32> to vector<8xf32>
    %44 = vector.shape_cast %43 : vector<8xf32> to vector<8x1xf32>
    %45 = arith.maximumf %42, %44 : vector<8x1xf32>
    %46 = vector.broadcast %45 : vector<8x1xf32> to vector<8x8xf32>
    %47 = arith.subf %41, %46 : vector<8x8xf32>
    %48 = math.exp %47 : vector<8x8xf32>
    %49 = arith.subf %42, %45 : vector<8x1xf32>
    %50 = math.exp %49 : vector<8x1xf32>
    %c0_24 = arith.constant 0 : index
    %c0_25 = arith.constant 0 : index
    %51 = vector.load %arg8[%c0_24, %c0_25] : memref<8x1xf32, #tpu.memory_space<vmem>>, vector<8x1xf32>
    %52 = arith.mulf %50, %51 : vector<8x1xf32>
    %cst_26 = arith.constant dense<0.000000e+00> : vector<8xf32>
    %53 = vector.multi_reduction <add>, %48, %cst_26 [1] : vector<8x8xf32> to vector<8xf32>
    %54 = vector.shape_cast %53 : vector<8xf32> to vector<8x1xf32>
    %55 = arith.addf %52, %54 : vector<8x1xf32>
    %c0_27 = arith.constant 0 : index
    %c0_28 = arith.constant 0 : index
    %56 = vector.load %arg8[%c0_27, %c0_28] : memref<8x1xf32, #tpu.memory_space<vmem>>, vector<8x1xf32>
    tpu.vector_store %arg8[%c0_27, %c0_28], %55 {strides = array<i32>} : memref<8x1xf32, #tpu.memory_space<vmem>>, vector<8x1xf32>,
    %c0_29 = arith.constant 0 : index
    %c0_30 = arith.constant 0 : index
    %57 = vector.load %arg7[%c0_29, %c0_30] : memref<8x1xf32, #tpu.memory_space<vmem>>, vector<8x1xf32>
    tpu.vector_store %arg7[%c0_29, %c0_30], %45 {strides = array<i32>} : memref<8x1xf32, #tpu.memory_space<vmem>>, vector<8x1xf32>,
    %58 = vector.shape_cast %45 : vector<8x1xf32> to vector<1x8x1xf32>
    %cst_31 = arith.constant dense<0xFF800000> : vector<1xf32>
    %59 = vector.multi_reduction <maximumf>, %58, %cst_31 [1, 2] : vector<1x8x1xf32> to vector<1xf32>
    %60 = vector.shape_cast %59 : vector<1xf32> to vector<1x1x1xf32>
    %61 = vector.extract %60[0, 0, 0] : f32 from vector<1x1x1xf32>
    %62 = arith.index_cast %arg1 : i32 to index
    %c0_32 = arith.constant 0 : index
    %c0_33 = arith.constant 0 : index
    %63 = vector.load %arg10[%62, %c0_32, %c0_33] : memref<1x1x8xf32, #tpu.memory_space<vmem>>, vector<1x1x8xf32>
    %64 = vector.shape_cast %63 : vector<1x1x8xf32> to vector<1x8xf32>
    %cst_34 = arith.constant dense<0xFF800000> : vector<8xf32>
    %65 = vector.multi_reduction <maximumf>, %14, %cst_34 [0] : vector<8x8xf32> to vector<8xf32>
    %66 = vector.shape_cast %65 : vector<8xf32> to vector<1x8xf32>
    %67 = arith.maximumf %64, %66 : vector<1x8xf32>
    %68 = vector.broadcast %61 : f32 to vector<8x1xf32>
    %69 = arith.subf %45, %68 : vector<8x1xf32>
    %70 = math.exp %69 : vector<8x1xf32>
    %cst_35 = arith.constant 0.000000e+00 : f32
    %71 = vector.broadcast %cst_35 : f32 to vector<8x1xf32>
    %72 = arith.select %24, %70, %71 : vector<8x1xi1>, vector<8x1xf32>
    %73 = vector.broadcast %72 : vector<8x1xf32> to vector<8x8xf32>
    %74 = arith.mulf %48, %73 : vector<8x8xf32>
    %cst_36 = arith.constant dense<0.000000e+00> : vector<8xf32>
    %75 = vector.multi_reduction <add>, %74, %cst_36 [0] : vector<8x8xf32> to vector<8xf32>
    %76 = vector.shape_cast %75 : vector<8xf32> to vector<1x8xf32>
    %cst_37 = arith.constant 0.000000e+00 : f32
    %77 = vector.broadcast %cst_37 : f32 to vector<1x8xf32>
    %78 = arith.cmpf ogt, %76, %77 : vector<1x8xf32>
    %79 = vector.broadcast %61 : f32 to vector<1x8xf32>
    %80 = arith.subf %79, %67 : vector<1x8xf32>
    %81 = math.exp %80 : vector<1x8xf32>
    %82 = arith.mulf %81, %76 : vector<1x8xf32>
    %cst_38 = arith.constant 0.000000e+00 : f32
    %83 = vector.broadcast %cst_38 : f32 to vector<1x8xf32>
    %84 = arith.select %78, %82, %83 : vector<1x8xi1>, vector<1x8xf32>
    %85 = arith.subf %64, %67 : vector<1x8xf32>
    %86 = math.exp %85 : vector<1x8xf32>
    %87 = arith.index_cast %arg1 : i32 to index
    %c0_39 = arith.constant 0 : index
    %c0_40 = arith.constant 0 : index
    %88 = vector.load %arg11[%87, %c0_39, %c0_40] : memref<1x1x8xf32, #tpu.memory_space<vmem>>, vector<1x1x8xf32>
    %89 = vector.shape_cast %88 : vector<1x1x8xf32> to vector<1x8xf32>
    %90 = arith.mulf %86, %89 : vector<1x8xf32>
    %91 = arith.addf %90, %84 : vector<1x8xf32>
    %92 = arith.index_cast %arg1 : i32 to index
    %c0_41 = arith.constant 0 : index
    %c0_42 = arith.constant 0 : index
    %93 = vector.load %arg11[%92, %c0_41, %c0_42] : memref<1x1x8xf32, #tpu.memory_space<vmem>>, vector<1x1x8xf32>
    %94 = vector.shape_cast %93 : vector<1x1x8xf32> to vector<1x8xf32>
    %95 = vector.shape_cast %91 : vector<1x8xf32> to vector<1x1x8xf32>
    tpu.vector_store %arg11[%92, %c0_41, %c0_42], %95 {strides = array<i32>} : memref<1x1x8xf32, #tpu.memory_space<vmem>>, vector<1x1x8xf32>,
    %96 = arith.index_cast %arg1 : i32 to index
    %c0_43 = arith.constant 0 : index
    %c0_44 = arith.constant 0 : index
    %97 = vector.load %arg10[%96, %c0_43, %c0_44] : memref<1x1x8xf32, #tpu.memory_space<vmem>>, vector<1x1x8xf32>
    %98 = vector.shape_cast %97 : vector<1x1x8xf32> to vector<1x8xf32>
    %99 = vector.shape_cast %67 : vector<1x8xf32> to vector<1x1x8xf32>
    tpu.vector_store %arg10[%96, %c0_43, %c0_44], %99 {strides = array<i32>} : memref<1x1x8xf32, #tpu.memory_space<vmem>>, vector<1x1x8xf32>,
    %c0_i32_45 = arith.constant 0 : i32
    %100 = arith.cmpi eq, %arg1, %c0_i32_45 : i32
    %101 = arith.extui %100 : i1 to i32
    %c0_i32_46 = arith.constant 0 : i32
    %102 = arith.cmpi ne, %101, %c0_i32_46 : i32
    scf.if %102 {
      %c0_50 = arith.constant 0 : index
      %c0_51 = arith.constant 0 : index
      %108 = vector.load %arg7[%c0_50, %c0_51] : memref<8x1xf32, #tpu.memory_space<vmem>>, vector<8x1xf32>
      %c0_52 = arith.constant 0 : index
      %c0_53 = arith.constant 0 : index
      %109 = vector.load %arg8[%c0_52, %c0_53] : memref<8x1xf32, #tpu.memory_space<vmem>>, vector<8x1xf32>
      %110 = math.log %109 : vector<8x1xf32>
      %111 = arith.addf %108, %110 : vector<8x1xf32>
      %c0_54 = arith.constant 0 : index
      %c0_55 = arith.constant 0 : index
      %112 = vector.load %arg9[%c0_54, %c0_55] : memref<8x1xf32, #tpu.memory_space<vmem>>, vector<8x1xf32>
      %cst_56 = arith.constant 2.000000e+00 : f32
      %113 = vector.broadcast %cst_56 : f32 to vector<8x1xf32>
      %114 = arith.mulf %113, %112 : vector<8x1xf32>
      %115 = arith.subf %111, %114 : vector<8x1xf32>
      %c0_57 = arith.constant 0 : index
      %c0_58 = arith.constant 0 : index
      %116 = vector.load %arg12[%c0_57, %c0_58] : memref<1x1xf32, #tpu.memory_space<vmem>>, vector<1x1xf32>
      %cst_59 = arith.constant 0.000000e+00 : f32
      %117 = vector.broadcast %cst_59 : f32 to vector<8x1xf32>
      %118 = arith.select %24, %115, %117 : vector<8x1xi1>, vector<8x1xf32>
      %119 = vector.shape_cast %118 : vector<8x1xf32> to vector<1x8x1xf32>
      %cst_60 = arith.constant dense<0.000000e+00> : vector<1xf32>
      %120 = vector.multi_reduction <add>, %119, %cst_60 [1, 2] : vector<1x8x1xf32> to vector<1xf32>
      %121 = vector.shape_cast %120 : vector<1xf32> to vector<1x1x1xf32>
      %122 = vector.extract %121[0, 0, 0] : f32 from vector<1x1x1xf32>
      %123 = vector.broadcast %122 : f32 to vector<1x1xf32>
      %124 = arith.addf %116, %123 : vector<1x1xf32>
      %c0_61 = arith.constant 0 : index
      %c0_62 = arith.constant 0 : index
      %125 = vector.load %arg12[%c0_61, %c0_62] : memref<1x1xf32, #tpu.memory_space<vmem>>, vector<1x1xf32>
      tpu.vector_store %arg12[%c0_61, %c0_62], %124 {strides = array<i32>} : memref<1x1xf32, #tpu.memory_space<vmem>>, vector<1x1xf32>,
    } else {
    }
    %c0_i32_47 = arith.constant 0 : i32
    %103 = arith.cmpi eq, %arg0, %c0_i32_47 : i32
    %c0_i32_48 = arith.constant 0 : i32
    %104 = arith.cmpi eq, %arg1, %c0_i32_48 : i32
    %105 = arith.andi %103, %104 : i1
    %106 = arith.extui %105 : i1 to i32
    %c0_i32_49 = arith.constant 0 : i32
    %107 = arith.cmpi ne, %106, %c0_i32_49 : i32
    scf.if %107 {
      %c0_50 = arith.constant 0 : index
      %c0_51 = arith.constant 0 : index
      %c0_52 = arith.constant 0 : index
      %108 = vector.load %arg10[%c0_50, %c0_51, %c0_52] : memref<1x1x8xf32, #tpu.memory_space<vmem>>, vector<1x1x8xf32>
      %c0_53 = arith.constant 0 : index
      %c0_54 = arith.constant 0 : index
      %c0_55 = arith.constant 0 : index
      %109 = vector.load %arg11[%c0_53, %c0_54, %c0_55] : memref<1x1x8xf32, #tpu.memory_space<vmem>>, vector<1x1x8xf32>
      %110 = math.log %109 : vector<1x1x8xf32>
      %111 = arith.addf %108, %110 : vector<1x1x8xf32>
      %112 = vector.shape_cast %111 : vector<1x1x8xf32> to vector<1x8xf32>
      %113 = tpu.iota {dimensions = array<i32: 0>} : vector<1x8xi32>
      %c8_i32_56 = arith.constant 8 : i32
      %114 = vector.broadcast %c8_i32_56 : i32 to vector<1x8xi32>
      %115 = arith.muli %113, %114 : vector<1x8xi32>
      %116 = tpu.iota {dimensions = array<i32: 1>} : vector<1x8xi32>
      %117 = arith.addi %115, %116 : vector<1x8xi32>
      %118 = vector.broadcast %1 : i32 to vector<1x8xi32>
      %119 = arith.cmpi slt, %117, %118 : vector<1x8xi32>
      %cst_57 = arith.constant 0.000000e+00 : f32
      %120 = vector.broadcast %cst_57 : f32 to vector<1x8xf32>
      %121 = arith.select %119, %112, %120 : vector<1x8xi1>, vector<1x8xf32>
      %122 = vector.shape_cast %121 : vector<1x8xf32> to vector<1x1x8xf32>
      %cst_58 = arith.constant dense<0.000000e+00> : vector<1xf32>
      %123 = vector.multi_reduction <add>, %122, %cst_58 [1, 2] : vector<1x1x8xf32> to vector<1xf32>
      %124 = vector.shape_cast %123 : vector<1xf32> to vector<1x1x1xf32>
      %125 = vector.extract %124[0, 0, 0] : f32 from vector<1x1x1xf32>
      %126 = arith.sitofp %1 : i32 to f32
      %c0_59 = arith.constant 0 : index
      %c0_60 = arith.constant 0 : index
      %127 = vector.load %arg12[%c0_59, %c0_60] : memref<1x1xf32, #tpu.memory_space<vmem>>, vector<1x1xf32>
      %128 = vector.broadcast %125 : f32 to vector<1x1xf32>
      %129 = arith.addf %127, %128 : vector<1x1xf32>
      %cst_61 = arith.constant 2.000000e+00 : f32
      %130 = arith.mulf %cst_61, %126 : f32
      %131 = vector.broadcast %130 : f32 to vector<1x1xf32>
      %132 = arith.divf %129, %131 : vector<1x1xf32>
      %c0_62 = arith.constant 0 : index
      %c0_63 = arith.constant 0 : index
      %133 = vector.load %arg6[%c0_62, %c0_63] : memref<1x1xf32, #tpu.memory_space<vmem>>, vector<1x1xf32>
      tpu.vector_store %arg6[%c0_62, %c0_63], %132 {strides = array<i32>} : memref<1x1xf32, #tpu.memory_space<vmem>>, vector<1x1xf32>,
    } else {
    }
    return
  }
  func.func @transform_0(%arg0: i32, %arg1: i32) -> (i32, i32) {
    %c0_i32 = arith.constant 0 : i32
    %c0_i32_0 = arith.constant 0 : i32
    %c0_i32_1 = arith.constant 0 : i32
    return %c0_i32, %c0_i32_0 : i32, i32
  }
  func.func @transform_1(%arg0: i32, %arg1: i32) -> (i32, i32) {
    %c0_i32 = arith.constant 0 : i32
    %c0_i32_0 = arith.constant 0 : i32
    %c0_i32_1 = arith.constant 0 : i32
    return %c0_i32, %c0_i32_0 : i32, i32
  }
  func.func @transform_2(%arg0: i32, %arg1: i32) -> (i32, i32) {
    %c0_i32 = arith.constant 0 : i32
    %c0_i32_0 = arith.constant 0 : i32
    return %arg0, %c0_i32 : i32, i32
  }
  func.func @transform_3(%arg0: i32, %arg1: i32) -> (i32, i32) {
    %c0_i32 = arith.constant 0 : i32
    %c0_i32_0 = arith.constant 0 : i32
    return %arg1, %c0_i32 : i32, i32
  }
  func.func @transform_4(%arg0: i32, %arg1: i32) -> (i32, i32) {
    %c0_i32 = arith.constant 0 : i32
    %c0_i32_0 = arith.constant 0 : i32
    %c0_i32_1 = arith.constant 0 : i32
    return %c0_i32, %c0_i32_0 : i32, i32
  }
}

</mosaic_0001>

<llo_original>
// kernel: tpu_custom_call.1
$region0: #{tpu_custom_call.1}
  #allocation0 [shape = 'u32[]', space=smem, size = 0x4, offset = 0x4, fixed_abs, tag = 'smem constant byte address 0x4 - core index']
  #allocation1 [shape = 'u32[144,128]{1,0:T(1,128)}', space=vmem, size = 0x12000, scoped, tag = 'internal scratch']
  #allocation2 [shape = 'f32[8,1]{1,0:T(8,128)}', space=vmem, size = 0x1000, scoped, tag = 'scratch operand']
  #allocation3 [shape = 'f32[8,1]{1,0:T(8,128)}', space=vmem, size = 0x1000, scoped, tag = 'scratch operand']
  #allocation4 [shape = 'f32[8,1]{1,0:T(8,128)}', space=vmem, size = 0x1000, scoped, tag = 'scratch operand']
  #allocation5 [shape = 'f32[1,1,8]{2,1,0:T(1,128)}', space=vmem, size = 0x200, scoped, tag = 'scratch operand']
  #allocation6 [shape = 'f32[1,1,8]{2,1,0:T(1,128)}', space=vmem, size = 0x200, scoped, tag = 'scratch operand']
  #allocation7 [shape = 'f32[1,1]{1,0:T(1,128)}', space=vmem, size = 0x200, scoped, tag = 'scratch operand']
  #allocation8 [shape = 'f32[1,1]{1,0:T(1,128)S(6)}', space=smem, size = 0x200, scoped, tag = 'scoped memory for tpu_custom_call.1']
  #allocation9 [shape = 's32[1,1]{1,0:T(1,128)S(6)}', space=smem, size = 0x200, scoped, tag = 'scoped memory for tpu_custom_call.1']
  %s0 = inlined_call_operand.<no memory space> [shape: f32[1,1], index: 0, kind: input, shape index: {}]
  %s1 = inlined_call_operand.<no memory space> [shape: s32[1,1], index: 1, kind: input, shape index: {}]
  %s2 = inlined_call_operand.vmem [shape: bf16[8,32], index: 2, kind: input, shape index: {}]
  %s3 = inlined_call_operand.vmem [shape: bf16[8,32], index: 3, kind: input, shape index: {}]
  %s4 = inlined_call_operand.hbm [shape: f32[1,1], index: 4, kind: output, shape index: {}]
  %s5 = sld [smem:[#allocation0]]
  $region46: #{tpu_custom_call.1} parent=0
    _
  %s7 = ssub.s32 1, %s5
  %s8 = scalar_select 0, %s7, %s5
  %9 = sst [smem:[#allocation8]] %s0
  %10 = sst [smem:[#allocation9]] %s1
  $region1: #{tpu_custom_call.1} parent=0
    #allocation10 [shape = 'u8[512]{0}', space=vmem, size = 0x400, scoped, tag = 'output window, operand 0, single buffered']
    #allocation11 [shape = 's32[1]{0}', space=sflag, size = 0x4, scoped, tag = 'scoped memory for tpu_custom_call.1']
    %11 = vsyncpa [#allocation11], 0
    // Predicated region
    $region2: #{tpu_custom_call.1} parent=1 // pred_check
      _
    $region3: #{tpu_custom_call.1} parent=1 // pred_check_branch
      %13 = sbr.rel (0) target = $region5
    $region4: #{tpu_custom_call.1} parent=1 // pred_region
      _
    $region5: #{tpu_custom_call.1} parent=1 // pred_fallthru
      _
    // Predicated region
    $region6: #{tpu_custom_call.1} parent=1 // pred_check
      _
    $region7: #{tpu_custom_call.1} parent=1 // pred_check_branch
      %15 = sbr.rel (0) target = $region9
    $region8: #{tpu_custom_call.1} parent=1 // pred_region
      _
    $region9: #{tpu_custom_call.1} parent=1 // pred_fallthru
      _
    // Predicated region
    $region10: #{tpu_custom_call.1} parent=1 // pred_check
      _
    $region11: #{tpu_custom_call.1} parent=1 // pred_check_branch
      %17 = sbr.rel (0) target = $region13
    $region12: #{tpu_custom_call.1} parent=1 // pred_region
      _
    $region13: #{tpu_custom_call.1} parent=1 // pred_fallthru
      _
    // Predicated region
    $region14: #{tpu_custom_call.1} parent=1 // pred_check
      _
    $region15: #{tpu_custom_call.1} parent=1 // pred_check_branch
      %19 = sbr.rel (0) target = $region17
    $region16: #{tpu_custom_call.1} parent=1 // pred_region
      _
    $region17: #{tpu_custom_call.1} parent=1 // pred_fallthru
      _
    %s21 = sld [smem:[#allocation8]]
    %s22 = sld [smem:[#allocation9]]
    %p23 = scmp.eq.s32.totalorder 0, 0
    %p24 = scmp.eq.s32.totalorder 0, 0
    %p25 = pnand %p23, %p24
    %p26 = pneg %p25
    // Predicated region
    $region18: #{tpu_custom_call.1} parent=1 // pred_check
      _
    $region19: #{tpu_custom_call.1} parent=1 // pred_check_branch
      %28 = sbr.rel (%p25) target = $region21
    $region20: #{tpu_custom_call.1} parent=1 // pred_region
      %vm29 = vcmask 0
      %30 = vst.msk [vmem:[#allocation7] sm:$0x1] %vm29, 0.0
      %vm31 = vcmask 57344
      %32 = vst.msk [vmem:[#allocation5] sm:$0x1] %vm31, -inf
      %33 = vst.msk [vmem:[#allocation6] sm:$0x1] %vm31, 0.0
    $region21: #{tpu_custom_call.1} parent=1 // pred_fallthru
      _
    // Predicated region
    $region22: #{tpu_custom_call.1} parent=1 // pred_check
      %p34 = pneg %p24
    $region23: #{tpu_custom_call.1} parent=1 // pred_check_branch
      %36 = sbr.rel (%p34) target = $region25
    $region24: #{tpu_custom_call.1} parent=1 // pred_region
      %vm37 = vcmask 7168
      %38 = vst.msk [vmem:[#allocation2] sm:$0xff] %vm37, -inf
      %39 = vst.msk [vmem:[#allocation3] sm:$0xff] %vm37, 0.0
      %40 = vst.msk [vmem:[#allocation4] sm:$0xff] %vm37, 0.0
    $region25: #{tpu_custom_call.1} parent=1 // pred_fallthru
      _
    %v41 = vld [vmem:[%s2] sm:$0xf]
    %v42 = vld [vmem:[%s3] sm:$0xf]
    %vm43 = vcmask 261120
    %v45 = vsel %vm43, %v41, 0
    %v48 = vsel %vm43, %v42, 0
    %50 = vmatprep.subr.bf16.mxu0 0
    %51 = vmatpush1.bf16.xpose.msra.mxu0 %v48
    %52 = vmatprep.subr.bf16.mxu0 0
    %53 = vmatpush1.bf16.xpose.msra.mxu0 0
    %54 = vmatprep.subr.bf16.mxu0 0
    %55 = vmatpush1.bf16.xpose.msra.mxu0 0
    %56 = vmatprep.subr.bf16.mxu0 0
    %57 = vmatpush1.bf16.xpose.msra.mxu0 0
    %58 = vmatprep.subr.bf16.mxu0 0
    %59 = vmatpush1.bf16.xpose.msra.mxu0 0
    %60 = vmatprep.subr.bf16.mxu0 0
    %61 = vmatpush1.bf16.xpose.msra.mxu0 0
    %62 = vmatprep.subr.bf16.mxu0 0
    %63 = vmatpush1.bf16.xpose.msra.mxu0 0
    %64 = vmatprep.subr.bf16.mxu0 0
    %65 = vmatpush1.bf16.xpose.msra.mxu0 0
    %66 = vmatprep.subr.bf16.mxu0 0
    %67 = vmatpush1.bf16.xpose.msra.mxu0 0
    %68 = vmatprep.subr.bf16.mxu0 0
    %69 = vmatpush1.bf16.xpose.msra.mxu0 0
    %70 = vmatprep.subr.bf16.mxu0 0
    %71 = vmatpush1.bf16.xpose.msra.mxu0 0
    %72 = vmatprep.subr.bf16.mxu0 0
    %73 = vmatpush1.bf16.xpose.msra.mxu0 0
    %74 = vmatprep.subr.bf16.mxu0 0
    %75 = vmatpush1.bf16.xpose.msra.mxu0 0
    %76 = vmatprep.subr.bf16.mxu0 0
    %77 = vmatpush1.bf16.xpose.msra.mxu0 0
    %78 = vmatprep.subr.bf16.mxu0 0
    %79 = vmatpush1.bf16.xpose.msra.mxu0 0
    %80 = vmatprep.subr.bf16.mxu0 0
    %81 = vmatpush1.bf16.xpose.msra.mxu0 0
    %82 = vmatprep.mubr.bf16.mxu0 0
    %83 = vmatmul.mubr.bf16.gmra.mrb[0].mxu0 %v45
    %v84 = vpop.f32.mrb[0].mxu0
    %v85 = vadd.f32 0.0, %v84
    %v86 = vpop.f32.mrb[0].mxu0
    %v87 = vpop.f32.mrb[0].mxu0
    %v88 = vpop.f32.mrb[0].mxu0
    %89 = vdwg.mxu0
    %v90 = vstv %s21
    %v91 = vmul.f32 %v90, %v85
    %s92 = smul.u32 0, 8
    %v93 = vlaneseq
    %v94 = vshrl.u32 %v93, 7
    %v95 = vstv %s92
    %v96 = vadd.s32 %v95, %v94
    %s97 = smul.u32 0, 8
    %v98 = vlaneseq
    %v99 = vand.u32 %v98, 127
    %v100 = vstv %s97
    %v101 = vadd.s32 %v100, %v99
    %v102 = vstv %s22
    %vm103 = vcmp.lt.s32.totalorder %v96, %v102
    %vm104 = vcmp.lt.s32.totalorder %v101, %v102
    %s105 = sadd.s32 0, 1
    %s106 = smul.u32 %s105, 8
    %p107 = scmp.lt.s32.totalorder %s97, %s106
    %s108 = sadd.s32 0, 1
    %s109 = smul.u32 %s108, 8
    %p110 = scmp.lt.s32.totalorder %s92, %s109
    %p111 = pnand %p107, %p110
    %p112 = pneg %p111
    // Predicated region
    $region26: #{tpu_custom_call.1} parent=1 // pred_check
      _
    $region27: #{tpu_custom_call.1} parent=1 // pred_check_branch
      %114 = sbr.rel (%p111) target = $region29
    $region28: #{tpu_custom_call.1} parent=1 // pred_region
      %vm115 = vcmp.eq.s32.totalorder %v96, %v101
      %v116 = vld [vmem:[#allocation4] sm:$0xff]
      %v117 = vsel %vm115, %v91, 0.0
      %vm118 = vcmask 64512
      %v119 = vsel %vm118, %v117, 0.0
      %120 = vadd.xlane.f32.xlu0 %v119
      %v121 = vpop.xlane.xlu0 %120
      %v122 = vadd.f32 %v116, %v121
      %vm123 = vcmask 7168
      %124 = vst.msk [vmem:[#allocation4] sm:$0xff] %vm123, %v122
    $region29: #{tpu_custom_call.1} parent=1 // pred_fallthru
      _
    %v125 = vsel %vm104, 1, 0
    %vm126 = vcmp.eq.s32.totalorder %v125, 1
    %v127 = vsel %vm126, %v91, -inf
    %v128 = vld [vmem:[#allocation2] sm:$0xff]
    %vm129 = vcmask 64512
    %v130 = vsel %vm129, %v127, -inf
    %131 = vmax.xlane.f32.xlu0 %v130
    %v132 = vpop.xlane.xlu0 %131
    %v133 = vmax.f32 %v128, %v132
    %135 = vset.pattern.permute.xlu0 0
    %136 = vperm.xlu0 %135, %v133
    %v137 = vpop.permute.xlu0 %136
    %v139 = vsub.f32 %v127, %v137
    %v140 = vmul.f32 %v139, 1.442695
    %v141 = vpow.pop %v140
    %v142 = vsub.f32 %v128, %v133
    %v143 = vmul.f32 %v142, 1.442695
    %v144 = vpow.pop %v143
    %v145 = vld [vmem:[#allocation3] sm:$0xff]
    %v146 = vmul.f32 %v144, %v145
    %v147 = vsel %vm129, %v141, 0.0
    %148 = vadd.xlane.f32.xlu0 %v147
    %v149 = vpop.xlane.xlu0 %148
    %v150 = vadd.f32 %v146, %v149
    %vm151 = vcmask 7168
    %152 = vst.msk [vmem:[#allocation3] sm:$0xff] %vm151, %v150
    %153 = vst.msk [vmem:[#allocation2] sm:$0xff] %vm151, %v133
    %v154 = vsel %vm151, %v133, -inf
    %155 = vmax.xlane.f32.xlu0 %v154
    %v156 = vpop.xlane.xlu0 %155
    %v157 = vrot.slane %v156, 4
    %v158 = vmax.f32 %v156, %v157
    %v159 = vrot.slane %v158, 2
    %v160 = vmax.f32 %v158, %v159
    %v161 = vrot.slane %v160, 1
    %v162 = vmax.f32 %v160, %v161
    %s163 = vtos %v162
    %v164 = vld [vmem:[#allocation5] sm:$0x1]
    %v165 = vsel %vm129, %v91, -inf
    %v166 = vrot.slane %v165, 4
    %v167 = vmax.f32 %v165, %v166
    %v168 = vrot.slane %v167, 2
    %v169 = vmax.f32 %v167, %v168
    %v170 = vrot.slane %v169, 1
    %v171 = vmax.f32 %v169, %v170
    %v172 = vmax.f32 %v164, %v171
    %v173 = vstv %s163
    %v174 = vsub.f32 %v133, %v173
    %v175 = vmul.f32 %v174, 1.442695
    %v176 = vpow.pop %v175
    %v177 = vsel %vm103, %v176, 0.0
    %179 = vset.pattern.permute.xlu0 0
    %180 = vperm.xlu0 %179, %v177
    %v181 = vpop.permute.xlu0 %180
    %v183 = vmul.f32 %v141, %v181
    %v184 = vsel %vm129, %v183, 0.0
    %v185 = vrot.slane %v184, 4
    %v186 = vadd.f32 %v184, %v185
    %v187 = vrot.slane %v186, 2
    %v188 = vadd.f32 %v186, %v187
    %v189 = vrot.slane %v188, 1
    %v190 = vadd.f32 %v188, %v189
    %vm191 = vcmp.gt.f32.partialorder %v190, 0.0
    %v192 = vsub.f32 %v173, %v172
    %v193 = vmul.f32 %v192, 1.442695
    %v194 = vpow.pop %v193
    %v195 = vmul.f32 %v194, %v190
    %v196 = vsel %vm191, %v195, 0.0
    %v197 = vsub.f32 %v164, %v172
    %v198 = vmul.f32 %v197, 1.442695
    %v199 = vpow.pop %v198
    %v200 = vld [vmem:[#allocation6] sm:$0x1]
    %v201 = vmul.f32 %v199, %v200
    %v202 = vadd.f32 %v201, %v196
    %vm203 = vcmask 57344
    %204 = vst.msk [vmem:[#allocation6] sm:$0x1] %vm203, %v202
    %205 = vst.msk [vmem:[#allocation5] sm:$0x1] %vm203, %v172
    // Predicated region
    $region30: #{tpu_custom_call.1} parent=1 // pred_check
      %p206 = pneg %p24
    $region31: #{tpu_custom_call.1} parent=1 // pred_check_branch
      %208 = sbr.rel (%p206) target = $region33
    $region32: #{tpu_custom_call.1} parent=1 // pred_region
      %v209 = vld [vmem:[#allocation2] sm:$0xff]
      %v210 = vld [vmem:[#allocation3] sm:$0xff]
      %v211 = vlog2.pop %v210
      %v212 = vmul.f32 %v211, 0.6931472
      %v213 = vadd.f32 %v209, %v212
      %v214 = vld [vmem:[#allocation4] sm:$0xff]
      %v215 = vmul.f32 %v214, 2.0
      %v216 = vsub.f32 %v213, %v215
      %v217 = vld [vmem:[#allocation7] sm:$0x1]
      %v218 = vsel %vm103, %v216, 0.0
      %v219 = vsel %vm151, %v218, 0.0
      %220 = vadd.xlane.f32.xlu0 %v219
      %v221 = vpop.xlane.xlu0 %220
      %v222 = vrot.slane %v221, 4
      %v223 = vadd.f32 %v221, %v222
      %v224 = vrot.slane %v223, 2
      %v225 = vadd.f32 %v223, %v224
      %v226 = vrot.slane %v225, 1
      %v227 = vadd.f32 %v225, %v226
      %s228 = vtos %v227
      %v229 = vstv %s228
      %v230 = vadd.f32 %v217, %v229
      %vm231 = vcmask 0
      %232 = vst.msk [vmem:[#allocation7] sm:$0x1] %vm231, %v230
    $region33: #{tpu_custom_call.1} parent=1 // pred_fallthru
      _
    // Predicated region
    $region34: #{tpu_custom_call.1} parent=1 // pred_check
      _
    $region35: #{tpu_custom_call.1} parent=1 // pred_check_branch
      %234 = sbr.rel (%p25) target = $region37
    $region36: #{tpu_custom_call.1} parent=1 // pred_region
      %v235 = vld [vmem:[#allocation5] sm:$0x1]
      %v236 = vld [vmem:[#allocation6] sm:$0x1]
      %v237 = vlog2.pop %v236
      %v238 = vmul.f32 %v237, 0.6931472
      %v239 = vadd.f32 %v235, %v238
      %v240 = vmul.u32 %v94, 8
      %v241 = vadd.s32 %v240, %v99
      %vm242 = vcmp.lt.s32.totalorder %v241, %v102
      %v243 = vsel %vm242, %v239, 0.0
      %v244 = vsel %vm203, %v243, 0.0
      %245 = vadd.xlane.f32.xlu0 %v244
      %v246 = vpop.xlane.xlu0 %245
      %v247 = vrot.slane %v246, 4
      %v248 = vadd.f32 %v246, %v247
      %v249 = vrot.slane %v248, 2
      %v250 = vadd.f32 %v248, %v249
      %v251 = vrot.slane %v250, 1
      %v252 = vadd.f32 %v250, %v251
      %s253 = vtos %v252
      %s254 = scvt.s32.f32 %s22
      %v255 = vld [vmem:[#allocation7] sm:$0x1]
      %v256 = vstv %s253
      %v257 = vadd.f32 %v255, %v256
      %s258 = smul.f32 %s254, 2.0
      %v259 = vstv %s258
      %v260 = vrcp.pop %v259
      %v261 = vmul.f32 %v257, %v260
      %vm262 = vcmask 0
      %263 = vst.msk [vmem:[#allocation10] sm:$0x1] %vm262, %v261
    $region37: #{tpu_custom_call.1} parent=1 // pred_fallthru
      _
    // Predicated region
    $region38: #{tpu_custom_call.1} parent=1 // pred_check
      _
    $region39: #{tpu_custom_call.1} parent=1 // pred_check_branch
      %265 = sbr.rel (0) target = $region41
    $region40: #{tpu_custom_call.1} parent=1 // pred_region
      %s267 = ssub.s32 16, 16
      %268 = vsyncadd [#allocation11], %s267
      %s270 = sshll.u32 [#allocation10], 4
      %s271 = int_to_ptr.vmem [resolvable:$true] %s270
      %273 = dma.vmem_to_hbm [thread:$0]  %s271, 16, %s4, [#allocation11]
    $region41: #{tpu_custom_call.1} parent=1 // pred_fallthru
      _
    // Predicated region
    $region42: #{tpu_custom_call.1} parent=1 // pred_check
      _
    $region43: #{tpu_custom_call.1} parent=1 // pred_check_branch
      %275 = sbr.rel (0) target = $region45
    $region44: #{tpu_custom_call.1} parent=1 // pred_region
      %276 = dma.done [#allocation11], 16
    $region45: #{tpu_custom_call.1} parent=1 // pred_fallthru
      _
    %277 = vsyncpa [#allocation11], 1

</llo_original>
